<compile_context>
chip_gen: v7x
topology: tpu7x:2x2x1
jax: 0.10.0
libtpu: 0.0.40
codegen_flags: <defaults>
</compile_context>

<pallas_src>
from typing import NamedTuple

import jax
import jax.numpy as jnp
from jax.experimental import pallas as pl
from jax.experimental.pallas import tpu as pltpu

LANE = 128


def _round_up(n, m):
    return ((n + m - 1) // m) * m


# ---------------------------------------------------------------------------
# Kernel: 3 fused matmuls, bf16 operands, f32 accumulate, lane-dense store.
# ---------------------------------------------------------------------------
def dueling_dqn_kernel(x_ref,            # (TB, S)              f32
                       w1_ref, b1_ref,   # (S, H) bf16, (1, H)  f32
                       wh_ref, bh_ref,   # (H, 2H) bf16, (1, 2H) f32   adv||value hidden
                       wo_ref, bo_ref,   # (2H, Fp) bf16, (1, Fp) f32  block-diag heads, lane-padded
                       y_ref):           # (TB, Fp)             f32   [:, :A]=adv, [:, A]=value
    x = x_ref[...].astype(jnp.bfloat16)

    # feature = ReLU(x @ W1 + b1)
    h = jnp.dot(x, w1_ref[...], preferred_element_type=jnp.float32) + b1_ref[...]
    h = jnp.maximum(h, 0.0).astype(jnp.bfloat16)

    # fused advantage/value hidden layer: ReLU(h @ [Wa1 | Wv1] + [ba1 | bv1])
    hh = jnp.dot(h, wh_ref[...], preferred_element_type=jnp.float32) + bh_ref[...]
    hh = jnp.maximum(hh, 0.0).astype(jnp.bfloat16)

    # fused (block-diagonal, lane-padded) output heads: [advantage | value | 0...]
    y = jnp.dot(hh, wo_ref[...], preferred_element_type=jnp.float32) + bo_ref[...]

    # Full 128-lane-multiple block -> unmasked, lane-dense stores.
    y_ref[...] = y


# ---------------------------------------------------------------------------
# One-time weight fusion (call once at init, NOT per forward step).
# ---------------------------------------------------------------------------
class FusedParams(NamedTuple):
    w1: jax.Array   # (S, H)    bf16
    b1: jax.Array   # (1, H)    f32
    wh: jax.Array   # (H, 2H)   bf16
    bh: jax.Array   # (1, 2H)   f32
    wo: jax.Array   # (2H, Fp)  bf16  (block-diag, zero-padded to Fp lanes)
    bo: jax.Array   # (1, Fp)   f32
    action_size: int


def fuse_params(params):
    (w1, b1, wa1, ba1, wa2, ba2, wv1, bv1, wv2, bv2) = params
    H = w1.shape[1]
    A = wa2.shape[1]
    Fp = _round_up(A + 1, LANE)          # lane-dense fused head width

    wh = jnp.concatenate([wa1, wv1], axis=1).astype(jnp.bfloat16)        # (H, 2H)
    bh = jnp.concatenate([ba1, bv1], axis=1).astype(jnp.float32)         # (1, 2H)

    wo = jnp.zeros((2 * H, Fp), jnp.float32)
    wo = wo.at[:H, :A].set(wa2)                                          # advantage head
    wo = wo.at[H:, A:A + 1].set(wv2)                                     # value head
    wo = wo.astype(jnp.bfloat16)

    bo = jnp.zeros((1, Fp), jnp.float32)
    bo = bo.at[:, :A].set(ba2)
    bo = bo.at[:, A:A + 1].set(bv2)

    return FusedParams(w1.astype(jnp.bfloat16), b1.astype(jnp.float32),
                       wh, bh, wo, bo, int(A))


# ---------------------------------------------------------------------------
# Forward wrapper
# ---------------------------------------------------------------------------
def agent_network_forward(x, fused: FusedParams, *, block_b=2048):
    """Full module forward: value + advantage - advantage.mean() (global scalar mean)."""
    w1, b1, wh, bh, wo, bo, A = fused
    B, S = x.shape
    H = w1.shape[1]
    Fp = wo.shape[1]

    # ---- batch tiling: big blocks, but keep >= 2 grid steps (v7x megacore) ---
    if B < 16:
        TB = B                                        # full batch dim, always legal
    else:
        TB = min(block_b, _round_up(pl.cdiv(B, 2), 8))
    grid = (pl.cdiv(B, TB),)

    # ---- VMEM budget (lane-padded layout) ------------------------------------
    def _lp(n):
        return _round_up(n, LANE)

    per_row_bytes = (
        2 * _lp(S) * 4            # x block, double-buffered (f32)
        + 2 * _lp(Fp) * 4         # y block, double-buffered (f32)
        + _lp(H) * 4 + _lp(2 * H) * 4            # f32 intermediates h, hh
        + (_lp(S) + _lp(H) + _lp(2 * H)) * 2     # bf16 casts
    )
    weight_bytes = (2 * (w1.size + wh.size + wo.size)
                    + 4 * (b1.size + bh.size + bo.size))
    vmem_limit = int(min(max(2 * (TB * per_row_bytes + weight_bytes), 32 << 20),
                         64 << 20))

    # ---- cost hint for the XLA scheduler --------------------------------------
    flops = 2 * B * (S * H + H * 2 * H + 2 * H * Fp)
    bytes_accessed = 4 * x.size + weight_bytes + 4 * B * Fp
    cost = pl.CostEstimate(flops=flops, transcendentals=0,
                           bytes_accessed=bytes_accessed)

    y = pl.pallas_call(
        dueling_dqn_kernel,
        out_shape=jax.ShapeDtypeStruct((B, Fp), jnp.float32),
        grid=grid,
        in_specs=[
            pl.BlockSpec((TB, S), lambda i: (i, 0)),        # x streams per block
            pl.BlockSpec((S, H), lambda i: (0, 0)),         # weights stay VMEM-resident
            pl.BlockSpec((1, H), lambda i: (0, 0)),
            pl.BlockSpec((H, 2 * H), lambda i: (0, 0)),
            pl.BlockSpec((1, 2 * H), lambda i: (0, 0)),
            pl.BlockSpec((2 * H, Fp), lambda i: (0, 0)),
            pl.BlockSpec((1, Fp), lambda i: (0, 0)),
        ],
        out_specs=pl.BlockSpec((TB, Fp), lambda i: (i, 0)),
        compiler_params=pltpu.CompilerParams(
            dimension_semantics=("parallel",),              # batch blocks independent
            vmem_limit_bytes=vmem_limit),
        cost_estimate=cost,
    )(x, w1, b1, wh, bh, wo, bo)

    adv = y[:, :A]
    val = y[:, A:A + 1]
    # Batch-global scalar mean (matches torch `advantage.mean()`), hoisted out of
    # the kernel so grid blocks stay independent / "parallel".
    return val + adv - jnp.mean(adv)


# ---------------------------------------------------------------------------
# Parameter init + pure-JAX references
# ---------------------------------------------------------------------------
def init_params(key, state_size, action_size, hidden):
    """Deterministic synthetic parameters (shapes match the nn.Linear layers)."""
    keys = jax.random.split(key, 10)

    def lin(kw, kb, fan_in, fan_out):
        bound = 1.0 / jnp.sqrt(jnp.float32(fan_in))
        w = jax.random.uniform(kw, (fan_in, fan_out), jnp.float32, -bound, bound)
        b = jax.random.uniform(kb, (1, fan_out), jnp.float32, -bound, bound)
        return w, b

    w1, b1 = lin(keys[0], keys[1], state_size, hidden)       # feature
    wa1, ba1 = lin(keys[2], keys[3], hidden, hidden)          # advantage[0]
    wa2, ba2 = lin(keys[4], keys[5], hidden, action_size)     # advantage[2]
    wv1, bv1 = lin(keys[6], keys[7], hidden, hidden)          # value[0]
    wv2, bv2 = lin(keys[8], keys[9], hidden, 1)               # value[2]
    return (w1, b1, wa1, ba1, wa2, ba2, wv1, bv1, wv2, bv2)


def reference_forward_f32(x, params):
    """Exact-f32 reference matching the PyTorch module semantics."""
    (w1, b1, wa1, ba1, wa2, ba2, wv1, bv1, wv2, bv2) = params
    h = jnp.maximum(x @ w1 + b1, 0.0)
    adv = jnp.maximum(h @ wa1 + ba1, 0.0) @ wa2 + ba2
    val = jnp.maximum(h @ wv1 + bv1, 0.0) @ wv2 + bv2
    return val + adv - adv.mean()


def reference_forward_bf16(x, params):
    """Reference mimicking the kernel's bf16-operand / f32-accumulate matmuls."""
    (w1, b1, wa1, ba1, wa2, ba2, wv1, bv1, wv2, bv2) = params

    def mm(a, w):
        return jnp.dot(a.astype(jnp.bfloat16), w.astype(jnp.bfloat16),
                       preferred_element_type=jnp.float32)

    h = jnp.maximum(mm(x, w1) + b1, 0.0)
    adv = mm(jnp.maximum(mm(h, wa1) + ba1, 0.0), wa2) + ba2
    val = mm(jnp.maximum(mm(h, wv1) + bv1, 0.0), wv2) + bv2
    return val + adv - jnp.mean(adv)


if __name__ == "__main__":
    B, state_size, action_size, hidden = 64, 16, 4, 32

    key = jax.random.PRNGKey(0)
    kx, kp = jax.random.split(key)
    x = jax.random.normal(kx, (B, state_size), jnp.float32)
    params = init_params(kp, state_size, action_size, hidden)

    # One-time fusion (outside the per-step forward).
    fused = fuse_params(params)

    # B=64 -> TB=32, grid=(2,): exercises the pipelined, two-grid-step path.
    out = agent_network_forward(x, fused)
    out = jax.block_until_ready(out)

    ref16 = reference_forward_bf16(x, params)   # same arithmetic as kernel
    ref32 = reference_forward_f32(x, params)    # module semantics in pure f32

    assert out.shape == (B, action_size)
    assert jnp.allclose(out, ref16, atol=2e-3, rtol=2e-3), "mismatch vs bf16 reference"
    assert jnp.allclose(out, ref32, atol=5e-2, rtol=5e-2), "mismatch vs f32 reference"

    print("KERNEL_OK")
</pallas_src>

<mosaic_0001>
module attributes {stable_mosaic.version = 11 : i64} {
  func.func @dueling_dqn_kernel(%arg0: i32, %arg1: memref<32x16xf32, #tpu.memory_space<vmem>>, %arg2: memref<16x32xbf16, #tpu.memory_space<vmem>>, %arg3: memref<1x32xf32, #tpu.memory_space<vmem>>, %arg4: memref<32x64xbf16, #tpu.memory_space<vmem>>, %arg5: memref<1x64xf32, #tpu.memory_space<vmem>>, %arg6: memref<64x128xbf16, #tpu.memory_space<vmem>>, %arg7: memref<1x128xf32, #tpu.memory_space<vmem>>, %arg8: memref<32x128xf32, #tpu.memory_space<vmem>>) attributes {dimension_semantics = [#tpu.dimension_semantics<parallel>], iteration_bounds = array<i64: 2>, scalar_prefetch = 0 : i64, scratch_operands = 0 : i64, tpu.core_type = #tpu.core_type<tc>, window_params = [{transform_indices = @transform_0, window_bounds = array<i64: 32, 16>}, {pipeline_mode = #tpu.pipeline_mode<synchronous>, transform_indices = @transform_1, window_bounds = array<i64: 16, 32>}, {pipeline_mode = #tpu.pipeline_mode<synchronous>, transform_indices = @transform_2, window_bounds = array<i64: 1, 32>}, {pipeline_mode = #tpu.pipeline_mode<synchronous>, transform_indices = @transform_3, window_bounds = array<i64: 32, 64>}, {pipeline_mode = #tpu.pipeline_mode<synchronous>, transform_indices = @transform_4, window_bounds = array<i64: 1, 64>}, {pipeline_mode = #tpu.pipeline_mode<synchronous>, transform_indices = @transform_5, window_bounds = array<i64: 64, 128>}, {pipeline_mode = #tpu.pipeline_mode<synchronous>, transform_indices = @transform_6, window_bounds = array<i64: 1, 128>}, {transform_indices = @transform_7, window_bounds = array<i64: 32, 128>}]} {
    %c0 = arith.constant 0 : index
    %c0_0 = arith.constant 0 : index
    %0 = vector.load %arg1[%c0, %c0_0] : memref<32x16xf32, #tpu.memory_space<vmem>>, vector<32x16xf32>
    %1 = arith.truncf %0 : vector<32x16xf32> to vector<32x16xbf16>
    %c0_1 = arith.constant 0 : index
    %c0_2 = arith.constant 0 : index
    %2 = vector.load %arg2[%c0_1, %c0_2] : memref<16x32xbf16, #tpu.memory_space<vmem>>, vector<16x32xbf16>
    %cst = arith.constant dense<0.000000e+00> : vector<32x32xf32>
    %3 = tpu.matmul %1, %2, %cst {dimension_numbers = #tpu.dot_dimension_numbers<[1], [0], [0], [1], [0, 0, 1, 1], [], []>} : vector<32x16xbf16>, vector<16x32xbf16>, vector<32x32xf32> -> vector<32x32xf32>
    %c0_3 = arith.constant 0 : index
    %c0_4 = arith.constant 0 : index
    %4 = vector.load %arg3[%c0_3, %c0_4] : memref<1x32xf32, #tpu.memory_space<vmem>>, vector<1x32xf32>
    %5 = vector.broadcast %4 : vector<1x32xf32> to vector<32x32xf32>
    %6 = arith.addf %3, %5 : vector<32x32xf32>
    %cst_5 = arith.constant 0.000000e+00 : f32
    %7 = vector.broadcast %cst_5 : f32 to vector<32x32xf32>
    %8 = arith.maximumf %6, %7 : vector<32x32xf32>
    %9 = arith.truncf %8 : vector<32x32xf32> to vector<32x32xbf16>
    %c0_6 = arith.constant 0 : index
    %c0_7 = arith.constant 0 : index
    %10 = vector.load %arg4[%c0_6, %c0_7] : memref<32x64xbf16, #tpu.memory_space<vmem>>, vector<32x64xbf16>
    %cst_8 = arith.constant dense<0.000000e+00> : vector<32x64xf32>
    %11 = tpu.matmul %9, %10, %cst_8 {dimension_numbers = #tpu.dot_dimension_numbers<[1], [0], [0], [1], [0, 0, 1, 1], [], []>} : vector<32x32xbf16>, vector<32x64xbf16>, vector<32x64xf32> -> vector<32x64xf32>
    %c0_9 = arith.constant 0 : index
    %c0_10 = arith.constant 0 : index
    %12 = vector.load %arg5[%c0_9, %c0_10] : memref<1x64xf32, #tpu.memory_space<vmem>>, vector<1x64xf32>
    %13 = vector.broadcast %12 : vector<1x64xf32> to vector<32x64xf32>
    %14 = arith.addf %11, %13 : vector<32x64xf32>
    %cst_11 = arith.constant 0.000000e+00 : f32
    %15 = vector.broadcast %cst_11 : f32 to vector<32x64xf32>
    %16 = arith.maximumf %14, %15 : vector<32x64xf32>
    %17 = arith.truncf %16 : vector<32x64xf32> to vector<32x64xbf16>
    %c0_12 = arith.constant 0 : index
    %c0_13 = arith.constant 0 : index
    %18 = vector.load %arg6[%c0_12, %c0_13] : memref<64x128xbf16, #tpu.memory_space<vmem>>, vector<64x128xbf16>
    %cst_14 = arith.constant dense<0.000000e+00> : vector<32x128xf32>
    %19 = tpu.matmul %17, %18, %cst_14 {dimension_numbers = #tpu.dot_dimension_numbers<[1], [0], [0], [1], [0, 0, 1, 1], [], []>} : vector<32x64xbf16>, vector<64x128xbf16>, vector<32x128xf32> -> vector<32x128xf32>
    %c0_15 = arith.constant 0 : index
    %c0_16 = arith.constant 0 : index
    %20 = vector.load %arg7[%c0_15, %c0_16] : memref<1x128xf32, #tpu.memory_space<vmem>>, vector<1x128xf32>
    %21 = vector.broadcast %20 : vector<1x128xf32> to vector<32x128xf32>
    %22 = arith.addf %19, %21 : vector<32x128xf32>
    %c0_17 = arith.constant 0 : index
    %c0_18 = arith.constant 0 : index
    %23 = vector.load %arg8[%c0_17, %c0_18] : memref<32x128xf32, #tpu.memory_space<vmem>>, vector<32x128xf32>
    tpu.vector_store %arg8[%c0_17, %c0_18], %22 {strides = array<i32>} : memref<32x128xf32, #tpu.memory_space<vmem>>, vector<32x128xf32>,
    return
  }
  func.func @transform_0(%arg0: i32) -> (i32, i32) {
    %c0_i32 = arith.constant 0 : i32
    %c0_i32_0 = arith.constant 0 : i32
    return %arg0, %c0_i32 : i32, i32
  }
  func.func @transform_1(%arg0: i32) -> (i32, i32) {
    %c0_i32 = arith.constant 0 : i32
    %c0_i32_0 = arith.constant 0 : i32
    %c0_i32_1 = arith.constant 0 : i32
    return %c0_i32, %c0_i32_0 : i32, i32
  }
  func.func @transform_2(%arg0: i32) -> (i32, i32) {
    %c0_i32 = arith.constant 0 : i32
    %c0_i32_0 = arith.constant 0 : i32
    %c0_i32_1 = arith.constant 0 : i32
    return %c0_i32, %c0_i32_0 : i32, i32
  }
  func.func @transform_3(%arg0: i32) -> (i32, i32) {
    %c0_i32 = arith.constant 0 : i32
    %c0_i32_0 = arith.constant 0 : i32
    %c0_i32_1 = arith.constant 0 : i32
    return %c0_i32, %c0_i32_0 : i32, i32
  }
  func.func @transform_4(%arg0: i32) -> (i32, i32) {
    %c0_i32 = arith.constant 0 : i32
    %c0_i32_0 = arith.constant 0 : i32
    %c0_i32_1 = arith.constant 0 : i32
    return %c0_i32, %c0_i32_0 : i32, i32
  }
  func.func @transform_5(%arg0: i32) -> (i32, i32) {
    %c0_i32 = arith.constant 0 : i32
    %c0_i32_0 = arith.constant 0 : i32
    %c0_i32_1 = arith.constant 0 : i32
    return %c0_i32, %c0_i32_0 : i32, i32
  }
  func.func @transform_6(%arg0: i32) -> (i32, i32) {
    %c0_i32 = arith.constant 0 : i32
    %c0_i32_0 = arith.constant 0 : i32
    %c0_i32_1 = arith.constant 0 : i32
    return %c0_i32, %c0_i32_0 : i32, i32
  }
  func.func @transform_7(%arg0: i32) -> (i32, i32) {
    %c0_i32 = arith.constant 0 : i32
    %c0_i32_0 = arith.constant 0 : i32
    return %arg0, %c0_i32 : i32, i32
  }
}

</mosaic_0001>

<llo_original>
// kernel: tpu_custom_call.1
$region0: #{tpu_custom_call.1}
  #allocation0 [shape = 'u32[]', space=smem, size = 0x4, offset = 0x4, fixed_abs, tag = 'smem constant byte address 0x4 - core index']
  #allocation1 [shape = 'u32[144,128]{1,0:T(1,128)}', space=vmem, size = 0x12000, scoped, tag = 'internal scratch']
  %s0 = inlined_call_operand.vmem [shape: f32[64,16], index: 0, kind: input, shape index: {}]
  %s1 = inlined_call_operand.vmem [shape: bf16[16,32], index: 1, kind: input, shape index: {}]
  %s2 = inlined_call_operand.vmem [shape: f32[1,32], index: 2, kind: input, shape index: {}]
  %s3 = inlined_call_operand.vmem [shape: bf16[32,64], index: 3, kind: input, shape index: {}]
  %s4 = inlined_call_operand.vmem [shape: f32[1,64], index: 4, kind: input, shape index: {}]
  %s5 = inlined_call_operand.vmem [shape: bf16[64,128], index: 5, kind: input, shape index: {}]
  %s6 = inlined_call_operand.vmem [shape: f32[1,128], index: 6, kind: input, shape index: {}]
  %s7 = inlined_call_operand.hbm [shape: f32[64,128], index: 7, kind: output, shape index: {}]
  %s8 = sld [smem:[#allocation0]]
  $region61: #{tpu_custom_call.1} parent=0
    _
  %s10 = ssub.s32 1, %s8
  %s11 = scalar_select 0, %s10, %s8
  $region1: #{tpu_custom_call.1} parent=0
    #allocation2 [shape = 'u8[32768]{0}', space=vmem, size = 0x8000, scoped, tag = 'output window, operand 0']
    #allocation3 [shape = 's32[2]{0}', space=sflag, size = 0x8, scoped, tag = 'scoped memory for tpu_custom_call.1']
    %12 = vsyncpa [#allocation3], 0
    %s13 = scalar_lea.sflag [#allocation3], 1
    %14 = vsyncpa %s13, 0
    loop: start=0, step=1, limit=4
    $region2: #{tpu_custom_call.1} parent=1 // loop_pre_header
      _
    $region3: #{tpu_custom_call.1} parent=1 // loop_header
      %s16 = sphi 0, %s20
      %p17 = scmp.ge.s32.totalorder %s16, 4
      %s26 = sphi 0, %s28
      %s29 = sphi 0, %s26
      %s30 = sphi 0, %s29
      %s46 = sphi 0, %s30
      %s50 = sphi 0, %s50
      %s52 = sphi 0, %s50
      %s53 = sphi 0, %s52
      %s67 = sphi 0, %s53
      %s71 = sphi 0, %s71
      %s73 = sphi 0, %s71
      %s74 = sphi 0, %s73
      %s88 = sphi 0, %s74
      %s92 = sphi 0, %s92
      %s94 = sphi 0, %s92
      %s95 = sphi 0, %s94
      %s109 = sphi 0, %s95
      %s113 = sphi 0, %s113
      %s115 = sphi 0, %s113
      %s116 = sphi 0, %s115
      %s130 = sphi 0, %s116
      %s134 = sphi 0, %s134
      %s136 = sphi 0, %s134
      %s137 = sphi 0, %s136
      %s151 = sphi 0, %s137
      %s155 = sphi 0, %s155
      %s157 = sphi 0, %s155
      %s158 = sphi 0, %s157
      %s172 = sphi 0, %s158
      %s178 = sphi 0, %s180
      %s181 = sphi 0, %s178
      %s182 = sphi 0, %s181
      %s198 = sphi 0, %s182
    $region4: #{tpu_custom_call.1} parent=1 // loop_header_branch
      %19 = sbr.rel (%p17) target = $region8
    $region5: #{tpu_custom_call.1} parent=1 // loop_body
      %s21 = ssub.s32 %s16, 1
      %s22 = ssub.s32 %s16, 2
      %s23 = sadd.s32 %s16, 1
      %s24 = ssub.s32 %s16, %s23
      %p25 = scmp.eq.s32.totalorder %s24, 0
      %s27 = sadd.s32 %s26, 1
      %s28 = scalar_select %p25, %s26, %s27
      %p31 = pneg %p25
      %p32 = scmp.eq.s32.totalorder %s16, 1
      %p33 = por %p31, %p32
      %p34 = scmp.ne.s32.totalorder %s26, %s29
      %p35 = scmp.eq.s32.totalorder %s16, 0
      %p36 = por %p34, %p35
      %p37 = scmp.ne.s32.totalorder %s26, %s29
      %p38 = scmp.eq.s32.totalorder %s21, 1
      %p39 = por %p37, %p38
      %p40 = scmp.ne.s32.totalorder %s29, %s30
      %p41 = scmp.eq.s32.totalorder %s21, 0
      %p42 = por %p40, %p41
      %p43 = scmp.ne.s32.totalorder %s29, %s30
      %p44 = scmp.eq.s32.totalorder %s22, 1
      %p45 = por %p43, %p44
      %p47 = scmp.ne.s32.totalorder %s30, %s46
      %p48 = scmp.eq.s32.totalorder %s22, 0
      %p49 = por %p47, %p48
      %s51 = sadd.s32 %s50, 1
      %p54 = scmp.eq.s32.totalorder %s16, 1
      %p55 = scmp.ne.s32.totalorder %s50, %s52
      %p56 = scmp.eq.s32.totalorder %s16, 0
      %p57 = por %p55, %p56
      %p58 = scmp.ne.s32.totalorder %s50, %s52
      %p59 = scmp.eq.s32.totalorder %s21, 1
      %p60 = por %p58, %p59
      %p61 = scmp.ne.s32.totalorder %s52, %s53
      %p62 = scmp.eq.s32.totalorder %s21, 0
      %p63 = por %p61, %p62
      %p64 = scmp.ne.s32.totalorder %s52, %s53
      %p65 = scmp.eq.s32.totalorder %s22, 1
      %p66 = por %p64, %p65
      %p68 = scmp.ne.s32.totalorder %s53, %s67
      %p69 = scmp.eq.s32.totalorder %s22, 0
      %p70 = por %p68, %p69
      %s72 = sadd.s32 %s71, 1
      %p75 = scmp.eq.s32.totalorder %s16, 1
      %p76 = scmp.ne.s32.totalorder %s71, %s73
      %p77 = scmp.eq.s32.totalorder %s16, 0
      %p78 = por %p76, %p77
      %p79 = scmp.ne.s32.totalorder %s71, %s73
      %p80 = scmp.eq.s32.totalorder %s21, 1
      %p81 = por %p79, %p80
      %p82 = scmp.ne.s32.totalorder %s73, %s74
      %p83 = scmp.eq.s32.totalorder %s21, 0
      %p84 = por %p82, %p83
      %p85 = scmp.ne.s32.totalorder %s73, %s74
      %p86 = scmp.eq.s32.totalorder %s22, 1
      %p87 = por %p85, %p86
      %p89 = scmp.ne.s32.totalorder %s74, %s88
      %p90 = scmp.eq.s32.totalorder %s22, 0
      %p91 = por %p89, %p90
      %s93 = sadd.s32 %s92, 1
      %p96 = scmp.eq.s32.totalorder %s16, 1
      %p97 = scmp.ne.s32.totalorder %s92, %s94
      %p98 = scmp.eq.s32.totalorder %s16, 0
      %p99 = por %p97, %p98
      %p100 = scmp.ne.s32.totalorder %s92, %s94
      %p101 = scmp.eq.s32.totalorder %s21, 1
      %p102 = por %p100, %p101
      %p103 = scmp.ne.s32.totalorder %s94, %s95
      %p104 = scmp.eq.s32.totalorder %s21, 0
      %p105 = por %p103, %p104
      %p106 = scmp.ne.s32.totalorder %s94, %s95
      %p107 = scmp.eq.s32.totalorder %s22, 1
      %p108 = por %p106, %p107
      %p110 = scmp.ne.s32.totalorder %s95, %s109
      %p111 = scmp.eq.s32.totalorder %s22, 0
      %p112 = por %p110, %p111
      %s114 = sadd.s32 %s113, 1
      %p117 = scmp.eq.s32.totalorder %s16, 1
      %p118 = scmp.ne.s32.totalorder %s113, %s115
      %p119 = scmp.eq.s32.totalorder %s16, 0
      %p120 = por %p118, %p119
      %p121 = scmp.ne.s32.totalorder %s113, %s115
      %p122 = scmp.eq.s32.totalorder %s21, 1
      %p123 = por %p121, %p122
      %p124 = scmp.ne.s32.totalorder %s115, %s116
      %p125 = scmp.eq.s32.totalorder %s21, 0
      %p126 = por %p124, %p125
      %p127 = scmp.ne.s32.totalorder %s115, %s116
      %p128 = scmp.eq.s32.totalorder %s22, 1
      %p129 = por %p127, %p128
      %p131 = scmp.ne.s32.totalorder %s116, %s130
      %p132 = scmp.eq.s32.totalorder %s22, 0
      %p133 = por %p131, %p132
      %s135 = sadd.s32 %s134, 1
      %p138 = scmp.eq.s32.totalorder %s16, 1
      %p139 = scmp.ne.s32.totalorder %s134, %s136
      %p140 = scmp.eq.s32.totalorder %s16, 0
      %p141 = por %p139, %p140
      %p142 = scmp.ne.s32.totalorder %s134, %s136
      %p143 = scmp.eq.s32.totalorder %s21, 1
      %p144 = por %p142, %p143
      %p145 = scmp.ne.s32.totalorder %s136, %s137
      %p146 = scmp.eq.s32.totalorder %s21, 0
      %p147 = por %p145, %p146
      %p148 = scmp.ne.s32.totalorder %s136, %s137
      %p149 = scmp.eq.s32.totalorder %s22, 1
      %p150 = por %p148, %p149
      %p152 = scmp.ne.s32.totalorder %s137, %s151
      %p153 = scmp.eq.s32.totalorder %s22, 0
      %p154 = por %p152, %p153
      %s156 = sadd.s32 %s155, 1
      %p159 = scmp.eq.s32.totalorder %s16, 1
      %p160 = scmp.ne.s32.totalorder %s155, %s157
      %p161 = scmp.eq.s32.totalorder %s16, 0
      %p162 = por %p160, %p161
      %p163 = scmp.ne.s32.totalorder %s155, %s157
      %p164 = scmp.eq.s32.totalorder %s21, 1
      %p165 = por %p163, %p164
      %p166 = scmp.ne.s32.totalorder %s157, %s158
      %p167 = scmp.eq.s32.totalorder %s21, 0
      %p168 = por %p166, %p167
      %p169 = scmp.ne.s32.totalorder %s157, %s158
      %p170 = scmp.eq.s32.totalorder %s22, 1
      %p171 = por %p169, %p170
      %p173 = scmp.ne.s32.totalorder %s158, %s172
      %p174 = scmp.eq.s32.totalorder %s22, 0
      %p175 = por %p173, %p174
      %s176 = ssub.s32 %s16, %s23
      %p177 = scmp.eq.s32.totalorder %s176, 0
      %s179 = sadd.s32 %s178, 1
      %s180 = scalar_select %p177, %s178, %s179
      %p183 = pneg %p177
      %p184 = scmp.eq.s32.totalorder %s16, 1
      %p185 = por %p183, %p184
      %p186 = scmp.ne.s32.totalorder %s178, %s181
      %p187 = scmp.eq.s32.totalorder %s16, 0
      %p188 = por %p186, %p187
      %p189 = scmp.ne.s32.totalorder %s178, %s181
      %p190 = scmp.eq.s32.totalorder %s21, 1
      %p191 = por %p189, %p190
      %p192 = scmp.ne.s32.totalorder %s181, %s182
      %p193 = scmp.eq.s32.totalorder %s21, 0
      %p194 = por %p192, %p193
      %p195 = scmp.ne.s32.totalorder %s181, %s182
      %p196 = scmp.eq.s32.totalorder %s22, 1
      %p197 = por %p195, %p196
      %p199 = scmp.ne.s32.totalorder %s182, %s198
      %p200 = scmp.eq.s32.totalorder %s22, 0
      %p201 = por %p199, %p200
      %p202 = scmp.le.s32.totalorder 1, %s16
      %p203 = scmp.lt.s32.totalorder %s16, 3
      %p204 = pnand %p202, %p203
      %p205 = pneg %p204
      // Predicated region
      $region9: #{tpu_custom_call.1} parent=5 // pred_check
        _
      $region10: #{tpu_custom_call.1} parent=5 // pred_check_branch
        %207 = sbr.rel (%p204) target = $region12
      $region11: #{tpu_custom_call.1} parent=5 // pred_region
        %s208 = ssub.s32 %s16, 1
        // Predicated region
        $region13: #{tpu_custom_call.1} parent=11 // pred_check
          %p209 = pneg %p63
        $region14: #{tpu_custom_call.1} parent=11 // pred_check_branch
          %211 = sbr.rel (%p209) target = $region16
        $region15: #{tpu_custom_call.1} parent=11 // pred_region
          _
        $region16: #{tpu_custom_call.1} parent=11 // pred_fallthru
          _
        // Predicated region
        $region17: #{tpu_custom_call.1} parent=11 // pred_check
          %p212 = pneg %p84
        $region18: #{tpu_custom_call.1} parent=11 // pred_check_branch
          %214 = sbr.rel (%p212) target = $region20
        $region19: #{tpu_custom_call.1} parent=11 // pred_region
          _
        $region20: #{tpu_custom_call.1} parent=11 // pred_fallthru
          _
        // Predicated region
        $region21: #{tpu_custom_call.1} parent=11 // pred_check
          %p215 = pneg %p105
        $region22: #{tpu_custom_call.1} parent=11 // pred_check_branch
          %217 = sbr.rel (%p215) target = $region24
        $region23: #{tpu_custom_call.1} parent=11 // pred_region
          _
        $region24: #{tpu_custom_call.1} parent=11 // pred_fallthru
          _
        // Predicated region
        $region25: #{tpu_custom_call.1} parent=11 // pred_check
          %p218 = pneg %p126
        $region26: #{tpu_custom_call.1} parent=11 // pred_check_branch
          %220 = sbr.rel (%p218) target = $region28
        $region27: #{tpu_custom_call.1} parent=11 // pred_region
          _
        $region28: #{tpu_custom_call.1} parent=11 // pred_fallthru
          _
        // Predicated region
        $region29: #{tpu_custom_call.1} parent=11 // pred_check
          %p221 = pneg %p147
        $region30: #{tpu_custom_call.1} parent=11 // pred_check_branch
          %223 = sbr.rel (%p221) target = $region32
        $region31: #{tpu_custom_call.1} parent=11 // pred_region
          _
        $region32: #{tpu_custom_call.1} parent=11 // pred_fallthru
          _
        // Predicated region
        $region33: #{tpu_custom_call.1} parent=11 // pred_check
          %p224 = pneg %p168
        $region34: #{tpu_custom_call.1} parent=11 // pred_check_branch
          %226 = sbr.rel (%p224) target = $region36
        $region35: #{tpu_custom_call.1} parent=11 // pred_region
          _
        $region36: #{tpu_custom_call.1} parent=11 // pred_fallthru
          _
      $region12: #{tpu_custom_call.1} parent=5 // pred_fallthru
        _
      %p227 = scmp.lt.s32.totalorder %s16, 2
      // Predicated region
      $region37: #{tpu_custom_call.1} parent=5 // pred_check
        %p228 = pneg %p227
      $region38: #{tpu_custom_call.1} parent=5 // pred_check_branch
        %230 = sbr.rel (%p228) target = $region40
      $region39: #{tpu_custom_call.1} parent=5 // pred_region
        // Predicated region
        $region41: #{tpu_custom_call.1} parent=39 // pred_check
          %p231 = pneg %p36
        $region42: #{tpu_custom_call.1} parent=39 // pred_check_branch
          %233 = sbr.rel (%p231) target = $region44
        $region43: #{tpu_custom_call.1} parent=39 // pred_region
          %s234 = smul.u32 4, %s16
          %p235 = scmp.lt.s32.totalorder %s234, 7
          %s236 = scalar_select %p235, %s234, 7
          %s237 = smul.addr %s236, 8
          %s238 = scalar_lea.vmem %s0, %s237
          %s239 = smul.u32 4, %s16
        $region44: #{tpu_custom_call.1} parent=39 // pred_fallthru
          _
      $region40: #{tpu_custom_call.1} parent=5 // pred_fallthru
        _
      %p240 = scmp.le.s32.totalorder 1, %s16
      %p241 = scmp.lt.s32.totalorder %s16, 3
      %p242 = pnand %p240, %p241
      %p243 = pneg %p242
      // Predicated region
      $region45: #{tpu_custom_call.1} parent=5 // pred_check
        _
      $region46: #{tpu_custom_call.1} parent=5 // pred_check_branch
        %245 = sbr.rel (%p242) target = $region48
      $region47: #{tpu_custom_call.1} parent=5 // pred_region
        %s246 = ssub.s32 %s16, 1
        %s247 = smul.u32 4, %s21
        %p248 = scmp.lt.s32.totalorder %s247, 7
        %s249 = scalar_select %p248, %s247, 7
        %s250 = smul.addr %s249, 8
        %s251 = scalar_lea.vmem %s0, %s250
        %p252 = pneg %p42
        %p253 = pneg %p39
        %p254 = pneg %p63
        %p255 = pneg %p60
        %p256 = pneg %p84
        %p257 = pneg %p81
        %p258 = pneg %p105
        %p259 = pneg %p102
        %p260 = pneg %p126
        %p261 = pneg %p123
        %p262 = pneg %p147
        %p263 = pneg %p144
        %p264 = pneg %p168
        %p265 = pneg %p165
        %p266 = pneg %p194
        %p267 = pneg %p191
        %s268 = sand.u32 %s181, 1
        %s269 = scalar_lea.sflag [#allocation3], %s268
        %s270 = sand.u32 %s181, 1
        %s271 = smul.addr %s270, 32
        %s272 = scalar_lea.vmem [#allocation2], %s271
        %s273 = smul.u32 4, %s21
        %p274 = scmp.lt.s32.totalorder %s273, 7
        %s275 = scalar_select %p274, %s273, 7
        %s276 = smul.addr %s275, 8
        %s277 = scalar_lea.vmem %s0, %s276
        %s278 = smul.u32 4, %s21
        %s279 = smul.u32 4, %s21
        %v281 = vld [vmem:[%s277] sm:$0xff]
        %v282 = vld [vmem:[%s277 + $0x8] sm:$0xff]
        %v283 = vld [vmem:[%s277 + $0x10] sm:$0xff]
        %v284 = vld [vmem:[%s277 + $0x18] sm:$0xff]
        %v285 = vpack.c.bf16 %v282, %v281
        %v286 = vpack.c.bf16 %v284, %v283
        %v287 = vld [vmem:[%s1] sm:$0xf]
        %v288 = vld [vmem:[%s1 + $0x4] sm:$0xf]
        %v289 = vld [vmem:[%s2] sm:$0x1]
        %v291 = vlaneseq
        %v292 = vshrl.u32 %v291, 7
        %v293 = vsub.s32 0, %v292
        %v294 = vrot.slane %v289, %v293
        %v298 = vunpack.c.l.b16 %v287
        %v299 = vunpack.c.l.b16 %v288
        %v300 = vpack.c.b16 %v299, %v298
        %vm302 = vcmask 130048
        %v304 = vsel %vm302, %v285, 0
        %v307 = vsel %vm302, %v286, 0
        %309 = vmatprep.subr.bf16.mxu0 0
        %310 = vmatpush1.bf16.msra.mxu0 %v300
        %311 = vmatprep.subr.bf16.mxu0 0
        %312 = vmatpush1.bf16.msra.mxu0 0
        %313 = vmatprep.subr.bf16.mxu0 0
        %314 = vmatpush1.bf16.msra.mxu0 0
        %315 = vmatprep.subr.bf16.mxu0 0
        %316 = vmatpush1.bf16.msra.mxu0 0
        %317 = vmatprep.subr.bf16.mxu0 0
        %318 = vmatpush1.bf16.msra.mxu0 0
        %319 = vmatprep.subr.bf16.mxu0 0
        %320 = vmatpush1.bf16.msra.mxu0 0
        %321 = vmatprep.subr.bf16.mxu0 0
        %322 = vmatpush1.bf16.msra.mxu0 0
        %323 = vmatprep.subr.bf16.mxu0 0
        %324 = vmatpush1.bf16.msra.mxu0 0
        %325 = vmatprep.subr.bf16.mxu0 0
        %326 = vmatpush1.bf16.msra.mxu0 0
        %327 = vmatprep.subr.bf16.mxu0 0
        %328 = vmatpush1.bf16.msra.mxu0 0
        %329 = vmatprep.subr.bf16.mxu0 0
        %330 = vmatpush1.bf16.msra.mxu0 0
        %331 = vmatprep.subr.bf16.mxu0 0
        %332 = vmatpush1.bf16.msra.mxu0 0
        %333 = vmatprep.subr.bf16.mxu0 0
        %334 = vmatpush1.bf16.msra.mxu0 0
        %335 = vmatprep.subr.bf16.mxu0 0
        %336 = vmatpush1.bf16.msra.mxu0 0
        %337 = vmatprep.subr.bf16.mxu0 0
        %338 = vmatpush1.bf16.msra.mxu0 0
        %339 = vmatprep.subr.bf16.mxu0 0
        %340 = vmatpush1.bf16.msra.mxu0 0
        %341 = vmatprep.mubr.bf16.mxu0 0
        %342 = vmatmul.mubr.bf16.gmra.mrb[0].mxu0 %v304
        %v343 = vpop.f32.mrb[0].mxu0
        %v344 = vadd.f32 %v294, %v343
        %v345 = vpop.f32.mrb[0].mxu0
        %v346 = vpop.f32.mrb[0].mxu0
        %v347 = vadd.f32 %v294, %v346
        %v348 = vpop.f32.mrb[0].mxu0
        %349 = vmatprep.mubr.bf16.mxu0 0
        %350 = vmatmul.mubr.bf16.gmra.mrb[0].mxu0 %v307
        %v351 = vpop.f32.mrb[0].mxu0
        %v352 = vadd.f32 %v294, %v351
        %v353 = vpop.f32.mrb[0].mxu0
        %v354 = vpop.f32.mrb[0].mxu0
        %v355 = vadd.f32 %v294, %v354
        %v356 = vpop.f32.mrb[0].mxu0
        %357 = vdwg.mxu0
        %v358 = vmax.f32 %v344, 0.0
        %v359 = vmax.f32 %v347, 0.0
        %v360 = vmax.f32 %v352, 0.0
        %v361 = vmax.f32 %v355, 0.0
        %v362 = vpack.c.bf16 %v359, %v358
        %v363 = vpack.c.bf16 %v361, %v360
        %v364 = vld [vmem:[%s3] sm:$0xf]
        %v365 = vld [vmem:[%s3 + $0x4] sm:$0xf]
        %v366 = vld [vmem:[%s3 + $0x8] sm:$0xf]
        %v367 = vld [vmem:[%s3 + $0xc] sm:$0xf]
        %v368 = vld [vmem:[%s4] sm:$0x1]
        %v370 = vlaneseq
        %v371 = vshrl.u32 %v370, 7
        %v372 = vsub.s32 0, %v371
        %v373 = vrot.slane %v368, %v372
        %v379 = vunpack.c.l.b16 %v364
        %v380 = vunpack.c.l.b16 %v365
        %v381 = vunpack.c.l.b16 %v366
        %v382 = vunpack.c.l.b16 %v367
        %v383 = vpack.c.b16 %v380, %v379
        %v384 = vpack.c.b16 %v382, %v381
        %vm387 = vcmask 261120
        %v389 = vsel %vm387, %v362, 0
        %v392 = vsel %vm387, %v363, 0
        %394 = vmatprep.subr.bf16.mxu0 0
        %395 = vmatpush1.bf16.msra.mxu0 %v383
        %396 = vmatprep.subr.bf16.mxu0 0
        %397 = vmatpush1.bf16.msra.mxu0 %v384
        %398 = vmatprep.subr.bf16.mxu0 0
        %399 = vmatpush1.bf16.msra.mxu0 0
        %400 = vmatprep.subr.bf16.mxu0 0
        %401 = vmatpush1.bf16.msra.mxu0 0
        %402 = vmatprep.subr.bf16.mxu0 0
        %403 = vmatpush1.bf16.msra.mxu0 0
        %404 = vmatprep.subr.bf16.mxu0 0
        %405 = vmatpush1.bf16.msra.mxu0 0
        %406 = vmatprep.subr.bf16.mxu0 0
        %407 = vmatpush1.bf16.msra.mxu0 0
        %408 = vmatprep.subr.bf16.mxu0 0
        %409 = vmatpush1.bf16.msra.mxu0 0
        %410 = vmatprep.subr.bf16.mxu0 0
        %411 = vmatpush1.bf16.msra.mxu0 0
        %412 = vmatprep.subr.bf16.mxu0 0
        %413 = vmatpush1.bf16.msra.mxu0 0
        %414 = vmatprep.subr.bf16.mxu0 0
        %415 = vmatpush1.bf16.msra.mxu0 0
        %416 = vmatprep.subr.bf16.mxu0 0
        %417 = vmatpush1.bf16.msra.mxu0 0
        %418 = vmatprep.subr.bf16.mxu0 0
        %419 = vmatpush1.bf16.msra.mxu0 0
        %420 = vmatprep.subr.bf16.mxu0 0
        %421 = vmatpush1.bf16.msra.mxu0 0
        %422 = vmatprep.subr.bf16.mxu0 0
        %423 = vmatpush1.bf16.msra.mxu0 0
        %424 = vmatprep.subr.bf16.mxu0 0
        %425 = vmatpush1.bf16.msra.mxu0 0
        %426 = vmatprep.mubr.bf16.mxu0 0
        %427 = vmatmul.mubr.bf16.gmra.mrb[0].mxu0 %v389
        %v428 = vpop.f32.mrb[0].mxu0
        %v429 = vadd.f32 %v373, %v428
        %v430 = vpop.f32.mrb[0].mxu0
        %v431 = vpop.f32.mrb[0].mxu0
        %v432 = vadd.f32 %v373, %v431
        %v433 = vpop.f32.mrb[0].mxu0
        %434 = vmatprep.mubr.bf16.mxu0 0
        %435 = vmatmul.mubr.bf16.gmra.mrb[0].mxu0 %v392
        %v436 = vpop.f32.mrb[0].mxu0
        %v437 = vadd.f32 %v373, %v436
        %v438 = vpop.f32.mrb[0].mxu0
        %v439 = vpop.f32.mrb[0].mxu0
        %v440 = vadd.f32 %v373, %v439
        %v441 = vpop.f32.mrb[0].mxu0
        %442 = vdwg.mxu0
        %v443 = vmax.f32 %v429, 0.0
        %v444 = vmax.f32 %v432, 0.0
        %v445 = vmax.f32 %v437, 0.0
        %v446 = vmax.f32 %v440, 0.0
        %v447 = vpack.c.bf16 %v444, %v443
        %v448 = vpack.c.bf16 %v446, %v445
        %v449 = vld [vmem:[%s5] sm:$0xf]
        %v450 = vld [vmem:[%s5 + $0x4] sm:$0xf]
        %v451 = vld [vmem:[%s5 + $0x8] sm:$0xf]
        %v452 = vld [vmem:[%s5 + $0xc] sm:$0xf]
        %v453 = vld [vmem:[%s5 + $0x10] sm:$0xf]
        %v454 = vld [vmem:[%s5 + $0x14] sm:$0xf]
        %v455 = vld [vmem:[%s5 + $0x18] sm:$0xf]
        %v456 = vld [vmem:[%s5 + $0x1c] sm:$0xf]
        %v457 = vld [vmem:[%s6] sm:$0x1]
        %v459 = vlaneseq
        %v460 = vshrl.u32 %v459, 7
        %v461 = vsub.s32 0, %v460
        %v462 = vrot.slane %v457, %v461
        %v472 = vunpack.c.l.b16 %v449
        %v473 = vunpack.c.l.b16 %v450
        %v474 = vunpack.c.l.b16 %v451
        %v475 = vunpack.c.l.b16 %v452
        %v476 = vunpack.c.l.b16 %v453
        %v477 = vunpack.c.l.b16 %v454
        %v478 = vunpack.c.l.b16 %v455
        %v479 = vunpack.c.l.b16 %v456
        %v480 = vpack.c.b16 %v473, %v472
        %v481 = vpack.c.b16 %v475, %v474
        %v482 = vpack.c.b16 %v477, %v476
        %v483 = vpack.c.b16 %v479, %v478
        %vm488 = vcmask 523264
        %v490 = vsel %vm488, %v447, 0
        %v493 = vsel %vm488, %v448, 0
        %495 = vmatprep.subr.bf16.mxu0 0
        %496 = vmatpush1.bf16.msra.mxu0 %v480
        %497 = vmatprep.subr.bf16.mxu0 0
        %498 = vmatpush1.bf16.msra.mxu0 %v481
        %499 = vmatprep.subr.bf16.mxu0 0
        %500 = vmatpush1.bf16.msra.mxu0 %v482
        %501 = vmatprep.subr.bf16.mxu0 0
        %502 = vmatpush1.bf16.msra.mxu0 %v483
        %503 = vmatprep.subr.bf16.mxu0 0
        %504 = vmatpush1.bf16.msra.mxu0 0
        %505 = vmatprep.subr.bf16.mxu0 0
        %506 = vmatpush1.bf16.msra.mxu0 0
        %507 = vmatprep.subr.bf16.mxu0 0
        %508 = vmatpush1.bf16.msra.mxu0 0
        %509 = vmatprep.subr.bf16.mxu0 0
        %510 = vmatpush1.bf16.msra.mxu0 0
        %511 = vmatprep.subr.bf16.mxu0 0
        %512 = vmatpush1.bf16.msra.mxu0 0
        %513 = vmatprep.subr.bf16.mxu0 0
        %514 = vmatpush1.bf16.msra.mxu0 0
        %515 = vmatprep.subr.bf16.mxu0 0
        %516 = vmatpush1.bf16.msra.mxu0 0
        %517 = vmatprep.subr.bf16.mxu0 0
        %518 = vmatpush1.bf16.msra.mxu0 0
        %519 = vmatprep.subr.bf16.mxu0 0
        %520 = vmatpush1.bf16.msra.mxu0 0
        %521 = vmatprep.subr.bf16.mxu0 0
        %522 = vmatpush1.bf16.msra.mxu0 0
        %523 = vmatprep.subr.bf16.mxu0 0
        %524 = vmatpush1.bf16.msra.mxu0 0
        %525 = vmatprep.subr.bf16.mxu0 0
        %526 = vmatpush1.bf16.msra.mxu0 0
        %527 = vmatprep.mubr.bf16.mxu0 0
        %528 = vmatmul.mubr.bf16.gmra.mrb[0].mxu0 %v490
        %v529 = vpop.f32.mrb[0].mxu0
        %v530 = vadd.f32 %v462, %v529
        %v531 = vpop.f32.mrb[0].mxu0
        %v532 = vpop.f32.mrb[0].mxu0
        %v533 = vadd.f32 %v462, %v532
        %v534 = vpop.f32.mrb[0].mxu0
        %535 = vmatprep.mubr.bf16.mxu0 0
        %536 = vmatmul.mubr.bf16.gmra.mrb[0].mxu0 %v493
        %v537 = vpop.f32.mrb[0].mxu0
        %v538 = vadd.f32 %v462, %v537
        %v539 = vpop.f32.mrb[0].mxu0
        %v540 = vpop.f32.mrb[0].mxu0
        %v541 = vadd.f32 %v462, %v540
        %v542 = vpop.f32.mrb[0].mxu0
        %543 = vdwg.mxu0
        %544 = vst [vmem:[%s272] sm:$0xff] %v530
        %545 = vst [vmem:[%s272 + $0x8] sm:$0xff] %v533
        %546 = vst [vmem:[%s272 + $0x10] sm:$0xff] %v538
        %547 = vst [vmem:[%s272 + $0x18] sm:$0xff] %v541
        %s548 = sand.u32 %s181, 1
        %s549 = scalar_lea.sflag [#allocation3], %s548
        %s550 = sand.u32 %s181, 1
        %s551 = smul.addr %s550, 32
        %s552 = scalar_lea.vmem [#allocation2], %s551
        // Predicated region
        $region49: #{tpu_custom_call.1} parent=47 // pred_check
          %p553 = pneg %p191
        $region50: #{tpu_custom_call.1} parent=47 // pred_check_branch
          %555 = sbr.rel (%p553) target = $region52
        $region51: #{tpu_custom_call.1} parent=47 // pred_region
          %s556 = smul.u32 4, %s21
          %s558 = ssub.s32 512, 512
          %559 = vsyncadd %s549, %s558
          %s560 = smul.addr %s556, 128
          %s561 = scalar_lea.hbm %s7, %s560
          %s562 = sshll.u32 %s552, 4
          %s563 = int_to_ptr.vmem [resolvable:$true] %s562
          %568 = dma.vmem_to_hbm [thread:$0]  %s563, 512, %s561, %s549, 128, 128, 8
        $region52: #{tpu_custom_call.1} parent=47 // pred_fallthru
          _
      $region48: #{tpu_custom_call.1} parent=5 // pred_fallthru
        _
      %p569 = scmp.le.s32.totalorder 2, %s16
      // Predicated region
      $region53: #{tpu_custom_call.1} parent=5 // pred_check
        %p570 = pneg %p569
      $region54: #{tpu_custom_call.1} parent=5 // pred_check_branch
        %572 = sbr.rel (%p570) target = $region56
      $region55: #{tpu_custom_call.1} parent=5 // pred_region
        %s573 = ssub.s32 %s16, 2
        // Predicated region
        $region57: #{tpu_custom_call.1} parent=55 // pred_check
          %p574 = pneg %p197
        $region58: #{tpu_custom_call.1} parent=55 // pred_check_branch
          %576 = sbr.rel (%p574) target = $region60
        $region59: #{tpu_custom_call.1} parent=55 // pred_region
          %s577 = sand.u32 %s182, 1
          %s578 = scalar_lea.sflag [#allocation3], %s577
          %s579 = sand.u32 %s182, 1
          %s580 = smul.addr %s579, 32
          %s581 = scalar_lea.vmem [#allocation2], %s580
          %582 = dma.done %s578, 512
        $region60: #{tpu_custom_call.1} parent=55 // pred_fallthru
          _
      $region56: #{tpu_custom_call.1} parent=5 // pred_fallthru
        _
    $region6: #{tpu_custom_call.1} parent=1 // loop_footer
      %s20 = sadd.s32 1, %s16
    $region7: #{tpu_custom_call.1} parent=1 // loop_footer_branch
      %15 = sbr.rel target = $region3
    $region8: #{tpu_custom_call.1} parent=1 // loop_exit
      _
    %583 = vsyncpa [#allocation3], 1
    %s584 = scalar_lea.sflag [#allocation3], 1
    %585 = vsyncpa %s584, 1

</llo_original>
